<compile_context>
chip_gen: v5e
topology: v5e:2x2
jax: 0.10.0
libtpu: 0.0.40
codegen_flags: <defaults>
</compile_context>

<pallas_src>
import functools
import math

import jax
import jax.numpy as jnp
from jax import lax
from jax.experimental import pallas as pl
from jax.experimental.pallas import tpu as pltpu


def _cross_attn_kernel(*refs, bt, drug_dim, cline_dim, dk, has_mask):
    """Fused cross-attention for a block of `bt` batch items.

    refs (with mask):    dc, cl, bias, wq, wkv, out
    refs (without mask): dc, cl, wq, wkv, out
    """
    if has_mask:
        dc_ref, cl_ref, bias_ref, wq_ref, wkv_ref, out_ref = refs
    else:
        dc_ref, cl_ref, wq_ref, wkv_ref, out_ref = refs
        bias_ref = None

    f = dc_ref.shape[-1]
    scale = 1.0 / math.sqrt(dk)

    # ---- fused projections over the whole batch block (one matmul each) ----
    # (bt, tokens, F) -> (bt*tokens, F): leading-dim merge, layout preserving
    # (drug_dim / cline_dim are multiples of the 8-row sublane tile).
    dc = dc_ref[...].reshape(bt * drug_dim, f)
    cl = cl_ref[...].reshape(bt * cline_dim, f)

    # Q projection; fold 1/sqrt(dk) into Q (drug*dk elements, cheaper than
    # scaling the (drug, cline) score matrix).
    q = jnp.dot(dc, wq_ref[...], preferred_element_type=jnp.float32) * scale
    # K and V in a single matmul against the concatenated (F, 2*dk) weight.
    kv = jnp.dot(cl, wkv_ref[...], preferred_element_type=jnp.float32)
    k = kv[:, :dk]
    v = kv[:, dk:]

    q3 = q.reshape(bt, drug_dim, dk)
    k3 = k.reshape(bt, cline_dim, dk)
    v3 = v.reshape(bt, cline_dim, dk)

    # ---- batched scores, NT form (no materialized transpose of K) ----
    s = lax.dot_general(q3, k3, (((2,), (2,)), ((0,), (0,))),
                        preferred_element_type=jnp.float32)     # (bt, drug, cline)
    if has_mask:
        s = s + bias_ref[...]        # additive bias: 0 keep / -1e9 masked

    # ---- softmax with deferred normalization ----
    m = jnp.max(s, axis=-1, keepdims=True)
    p = jnp.exp(s - m)
    denom = jnp.sum(p, axis=-1, keepdims=True)

    o = lax.dot_general(p, v3, (((2,), (1,)), ((0,), (0,))),
                        preferred_element_type=jnp.float32)     # (bt, drug, dk)
    # Normalize the (drug, dk) output instead of the (drug, cline) attention
    # matrix; approx reciprocal goes to the EUP slot (effectively free).
    o = o * pl.reciprocal(denom, approx=True)

    out_ref[...] = o.astype(out_ref.dtype)


def _pick_batch_block(batch_size, drug_dim, cline_dim):
    """Choose how many batch items to fuse per grid step."""
    # Aim for a few hundred projection rows per MXU push (128/256-row targets
    # for v5e / v6e-v7x) while keeping the grid length >= 2 when the batch
    # allows, so both v7x TensorCores receive grid iterations.
    target_rows = 256
    bt = max(1, target_rows // max(drug_dim, cline_dim, 1))
    bt = min(bt, batch_size)
    while bt > 1 and (batch_size // bt) < 2:
        bt = max(1, bt // 2)
    while batch_size % bt:      # require even division of the batch
        bt -= 1
    return bt


def cross_attention_forward(dc_fea, cline_fea, wq, wk, wv, mask=None, *,
                            batch_size, drug_dim, cline_dim):
    """Equivalent of cross_attention.forward (with a standard SDPA CrossAttention)."""
    # Glue: reshapes mirror the PyTorch wrapper.  Inputs keep their dtype
    # (bf16 recommended) — the MXU accumulates in f32 inside the kernel.
    dc = dc_fea.reshape(batch_size, drug_dim, -1)
    cl = cline_fea.reshape(batch_size, cline_dim, -1)

    f = dc.shape[-1]
    dk = wq.shape[-1]
    assert cl.shape[-1] == f and wq.shape[0] == f
    assert wk.shape == (f, dk) and wv.shape == (f, dk)

    # Host-side concat of K/V weights -> one (F, 2*dk) projection matmul.
    wkv = jnp.concatenate([wk, wv], axis=-1)

    bt = _pick_batch_block(batch_size, drug_dim, cline_dim)
    grid = (batch_size // bt,)

    has_mask = mask is not None
    kernel = functools.partial(
        _cross_attn_kernel, bt=bt, drug_dim=drug_dim, cline_dim=cline_dim,
        dk=dk, has_mask=has_mask)

    in_specs = [
        pl.BlockSpec((bt, drug_dim, f), lambda b: (b, 0, 0)),
        pl.BlockSpec((bt, cline_dim, f), lambda b: (b, 0, 0)),
    ]
    inputs = [dc, cl]
    if has_mask:
        # Additive bias built at trace time: 0.0 for kept keys, -1e9 for masked.
        bias = ((mask.reshape(batch_size, 1, cline_dim).astype(jnp.float32)
                 - 1.0) * 1e9)
        in_specs.append(pl.BlockSpec((bt, 1, cline_dim), lambda b: (b, 0, 0)))
        inputs.append(bias)
    in_specs += [
        pl.BlockSpec((f, dk), lambda b: (0, 0)),        # Wq (resident)
        pl.BlockSpec((f, 2 * dk), lambda b: (0, 0)),    # Wk|Wv (resident)
    ]
    inputs += [wq, wkv]

    out = pl.pallas_call(
        kernel,
        out_shape=jax.ShapeDtypeStruct((batch_size, drug_dim, dk), jnp.float32),
        grid=grid,
        in_specs=in_specs,
        out_specs=pl.BlockSpec((bt, drug_dim, dk), lambda b: (b, 0, 0)),
        compiler_params=pltpu.CompilerParams(
            dimension_semantics=("parallel",)),
    )(*inputs)
    return out


def _reference(dc_fea, cline_fea, wq, wk, wv, mask, *, batch_size, drug_dim,
               cline_dim):
    dc = dc_fea.reshape(batch_size, drug_dim, -1).astype(jnp.float32)
    cl = cline_fea.reshape(batch_size, cline_dim, -1).astype(jnp.float32)
    wq, wk, wv = (w.astype(jnp.float32) for w in (wq, wk, wv))
    q = jnp.einsum("bqf,fd->bqd", dc, wq)
    k = jnp.einsum("bkf,fd->bkd", cl, wk)
    v = jnp.einsum("bkf,fd->bkd", cl, wv)
    s = jnp.einsum("bqd,bkd->bqk", q, k) / math.sqrt(wq.shape[-1])
    if mask is not None:
        s = jnp.where(mask[:, None, :] > 0.0, s, -1e9)
    a = jax.nn.softmax(s, axis=-1)
    return jnp.einsum("bqk,bkd->bqd", a, v)


if __name__ == "__main__":
    # args-equivalent config (small, synthetic)
    batch_size = 8
    drug_dim = 8      # number of drug-graph "tokens"
    cline_dim = 16    # number of cell-line "tokens"
    F = 32            # per-token feature width after the reshape(-1)
    dk = 32           # attention head width

    key = jax.random.PRNGKey(0)
    k_dc, k_cl, k_wq, k_wk, k_wv, k_m = jax.random.split(key, 6)

    # Raw inputs carry trailing spatial-ish dims that the wrapper flattens
    # (mimicking .reshape(batch_size, dim, -1) on conv/graph features).
    # Kept in bf16: the kernel is DMA-bound, bf16 halves input bytes.
    dc_fea = jax.random.normal(
        k_dc, (batch_size, drug_dim, 4, F // 4), jnp.float32).astype(jnp.bfloat16)
    cline_fea = jax.random.normal(
        k_cl, (batch_size, cline_dim, 4, F // 4), jnp.float32).astype(jnp.bfloat16)

    # Deterministic parameter init (Xavier-uniform-like), shapes from CrossAttention.
    limit = math.sqrt(6.0 / (F + dk))
    wq = jax.random.uniform(k_wq, (F, dk), jnp.float32, -limit, limit).astype(jnp.bfloat16)
    wk = jax.random.uniform(k_wk, (F, dk), jnp.float32, -limit, limit).astype(jnp.bfloat16)
    wv = jax.random.uniform(k_wv, (F, dk), jnp.float32, -limit, limit).astype(jnp.bfloat16)

    # Binary mask over cline positions (mask.x.reshape(batch_size, cline_dim)).
    mask = (jax.random.uniform(k_m, (batch_size, cline_dim)) > 0.2).astype(jnp.float32)

    # Masked path.
    out = cross_attention_forward(dc_fea, cline_fea, wq, wk, wv, mask,
                                  batch_size=batch_size, drug_dim=drug_dim,
                                  cline_dim=cline_dim)
    out = jax.block_until_ready(out)
    ref = _reference(dc_fea, cline_fea, wq, wk, wv, mask,
                     batch_size=batch_size, drug_dim=drug_dim, cline_dim=cline_dim)
    assert out.shape == (batch_size, drug_dim, dk)
    assert jnp.allclose(out, ref, atol=2e-2, rtol=2e-2), "mismatch vs reference (masked)"

    # Unmasked path (mask input skipped entirely at trace time).
    out_nm = cross_attention_forward(dc_fea, cline_fea, wq, wk, wv, None,
                                     batch_size=batch_size, drug_dim=drug_dim,
                                     cline_dim=cline_dim)
    out_nm = jax.block_until_ready(out_nm)
    ref_nm = _reference(dc_fea, cline_fea, wq, wk, wv, None,
                        batch_size=batch_size, drug_dim=drug_dim, cline_dim=cline_dim)
    assert jnp.allclose(out_nm, ref_nm, atol=2e-2, rtol=2e-2), "mismatch vs reference (no mask)"

    print("KERNEL_OK")
</pallas_src>

<mosaic_0001>
module attributes {stable_mosaic.version = 11 : i64} {
  func.func @_cross_attn_kernel(%arg0: i32, %arg1: memref<4x8x32xbf16, #tpu.memory_space<vmem>>, %arg2: memref<4x16x32xbf16, #tpu.memory_space<vmem>>, %arg3: memref<4x1x16xf32, #tpu.memory_space<vmem>>, %arg4: memref<32x32xbf16, #tpu.memory_space<vmem>>, %arg5: memref<32x64xbf16, #tpu.memory_space<vmem>>, %arg6: memref<4x8x32xf32, #tpu.memory_space<vmem>>) attributes {dimension_semantics = [#tpu.dimension_semantics<parallel>], iteration_bounds = array<i64: 2>, scalar_prefetch = 0 : i64, scratch_operands = 0 : i64, tpu.core_type = #tpu.core_type<tc>, window_params = [{transform_indices = @transform_0, window_bounds = array<i64: 4, 8, 32>}, {transform_indices = @transform_1, window_bounds = array<i64: 4, 16, 32>}, {transform_indices = @transform_2, window_bounds = array<i64: 4, 1, 16>}, {pipeline_mode = #tpu.pipeline_mode<synchronous>, transform_indices = @transform_3, window_bounds = array<i64: 32, 32>}, {pipeline_mode = #tpu.pipeline_mode<synchronous>, transform_indices = @transform_4, window_bounds = array<i64: 32, 64>}, {transform_indices = @transform_5, window_bounds = array<i64: 4, 8, 32>}]} {
    %c0 = arith.constant 0 : index
    %c0_0 = arith.constant 0 : index
    %c0_1 = arith.constant 0 : index
    %0 = vector.load %arg1[%c0, %c0_0, %c0_1] : memref<4x8x32xbf16, #tpu.memory_space<vmem>>, vector<4x8x32xbf16>
    %1 = vector.shape_cast %0 : vector<4x8x32xbf16> to vector<32x32xbf16>
    %c0_2 = arith.constant 0 : index
    %c0_3 = arith.constant 0 : index
    %c0_4 = arith.constant 0 : index
    %2 = vector.load %arg2[%c0_2, %c0_3, %c0_4] : memref<4x16x32xbf16, #tpu.memory_space<vmem>>, vector<4x16x32xbf16>
    %3 = vector.shape_cast %2 : vector<4x16x32xbf16> to vector<64x32xbf16>
    %c0_5 = arith.constant 0 : index
    %c0_6 = arith.constant 0 : index
    %4 = vector.load %arg4[%c0_5, %c0_6] : memref<32x32xbf16, #tpu.memory_space<vmem>>, vector<32x32xbf16>
    %cst = arith.constant dense<0.000000e+00> : vector<32x32xf32>
    %5 = tpu.matmul %1, %4, %cst {dimension_numbers = #tpu.dot_dimension_numbers<[1], [0], [0], [1], [0, 0, 1, 1], [], []>} : vector<32x32xbf16>, vector<32x32xbf16>, vector<32x32xf32> -> vector<32x32xf32>
    %cst_7 = arith.constant 0.176776692 : f32
    %6 = vector.broadcast %cst_7 : f32 to vector<32x32xf32>
    %7 = arith.mulf %5, %6 : vector<32x32xf32>
    %c0_8 = arith.constant 0 : index
    %c0_9 = arith.constant 0 : index
    %8 = vector.load %arg5[%c0_8, %c0_9] : memref<32x64xbf16, #tpu.memory_space<vmem>>, vector<32x64xbf16>
    %cst_10 = arith.constant dense<0.000000e+00> : vector<64x64xf32>
    %9 = tpu.matmul %3, %8, %cst_10 {dimension_numbers = #tpu.dot_dimension_numbers<[1], [0], [0], [1], [0, 0, 1, 1], [], []>} : vector<64x32xbf16>, vector<32x64xbf16>, vector<64x64xf32> -> vector<64x64xf32>
    %10 = vector.extract_strided_slice %9 {offsets = [0, 0], sizes = [64, 32], strides = [1, 1]} : vector<64x64xf32> to vector<64x32xf32>
    %11 = vector.extract_strided_slice %9 {offsets = [0, 32], sizes = [64, 32], strides = [1, 1]} : vector<64x64xf32> to vector<64x32xf32>
    %12 = vector.shape_cast %7 : vector<32x32xf32> to vector<4x8x32xf32>
    %13 = vector.shape_cast %10 : vector<64x32xf32> to vector<4x16x32xf32>
    %14 = vector.shape_cast %11 : vector<64x32xf32> to vector<4x16x32xf32>
    %cst_11 = arith.constant dense<0.000000e+00> : vector<4x8x16xf32>
    %15 = tpu.matmul %12, %13, %cst_11 {dimension_numbers = #tpu.dot_dimension_numbers<[2], [2], [1], [1], [0, 0, 0, 1, 1, 1], [0], [0]>} : vector<4x8x32xf32>, vector<4x16x32xf32>, vector<4x8x16xf32> -> vector<4x8x16xf32>
    %c0_12 = arith.constant 0 : index
    %c0_13 = arith.constant 0 : index
    %c0_14 = arith.constant 0 : index
    %16 = vector.load %arg3[%c0_12, %c0_13, %c0_14] : memref<4x1x16xf32, #tpu.memory_space<vmem>>, vector<4x1x16xf32>
    %17 = vector.broadcast %16 : vector<4x1x16xf32> to vector<4x8x16xf32>
    %18 = arith.addf %15, %17 : vector<4x8x16xf32>
    %cst_15 = arith.constant dense<0xFF800000> : vector<4x8xf32>
    %19 = vector.multi_reduction <maximumf>, %18, %cst_15 [2] : vector<4x8x16xf32> to vector<4x8xf32>
    %20 = vector.shape_cast %19 : vector<4x8xf32> to vector<4x8x1xf32>
    %21 = vector.broadcast %20 : vector<4x8x1xf32> to vector<4x8x16xf32>
    %22 = arith.subf %18, %21 : vector<4x8x16xf32>
    %23 = math.exp %22 : vector<4x8x16xf32>
    %cst_16 = arith.constant dense<0.000000e+00> : vector<4x8xf32>
    %24 = vector.multi_reduction <add>, %23, %cst_16 [2] : vector<4x8x16xf32> to vector<4x8xf32>
    %25 = vector.shape_cast %24 : vector<4x8xf32> to vector<4x8x1xf32>
    %cst_17 = arith.constant dense<0.000000e+00> : vector<4x8x32xf32>
    %26 = tpu.matmul %23, %14, %cst_17 {dimension_numbers = #tpu.dot_dimension_numbers<[2], [1], [1], [2], [0, 0, 0, 1, 1, 2], [0], [0]>} : vector<4x8x16xf32>, vector<4x16x32xf32>, vector<4x8x32xf32> -> vector<4x8x32xf32>
    %27 = tpu.reciprocal %25 {approx = true} : vector<4x8x1xf32> -> vector<4x8x1xf32>
    %28 = vector.broadcast %27 : vector<4x8x1xf32> to vector<4x8x32xf32>
    %29 = arith.mulf %26, %28 : vector<4x8x32xf32>
    %c0_18 = arith.constant 0 : index
    %c0_19 = arith.constant 0 : index
    %c0_20 = arith.constant 0 : index
    %30 = vector.load %arg6[%c0_18, %c0_19, %c0_20] : memref<4x8x32xf32, #tpu.memory_space<vmem>>, vector<4x8x32xf32>
    tpu.vector_store %arg6[%c0_18, %c0_19, %c0_20], %29 {strides = array<i32>} : memref<4x8x32xf32, #tpu.memory_space<vmem>>, vector<4x8x32xf32>,
    return
  }
  func.func @transform_0(%arg0: i32) -> (i32, i32, i32) {
    %c0_i32 = arith.constant 0 : i32
    %c0_i32_0 = arith.constant 0 : i32
    %c0_i32_1 = arith.constant 0 : i32
    return %arg0, %c0_i32, %c0_i32_0 : i32, i32, i32
  }
  func.func @transform_1(%arg0: i32) -> (i32, i32, i32) {
    %c0_i32 = arith.constant 0 : i32
    %c0_i32_0 = arith.constant 0 : i32
    %c0_i32_1 = arith.constant 0 : i32
    return %arg0, %c0_i32, %c0_i32_0 : i32, i32, i32
  }
  func.func @transform_2(%arg0: i32) -> (i32, i32, i32) {
    %c0_i32 = arith.constant 0 : i32
    %c0_i32_0 = arith.constant 0 : i32
    %c0_i32_1 = arith.constant 0 : i32
    return %arg0, %c0_i32, %c0_i32_0 : i32, i32, i32
  }
  func.func @transform_3(%arg0: i32) -> (i32, i32) {
    %c0_i32 = arith.constant 0 : i32
    %c0_i32_0 = arith.constant 0 : i32
    %c0_i32_1 = arith.constant 0 : i32
    return %c0_i32, %c0_i32_0 : i32, i32
  }
  func.func @transform_4(%arg0: i32) -> (i32, i32) {
    %c0_i32 = arith.constant 0 : i32
    %c0_i32_0 = arith.constant 0 : i32
    %c0_i32_1 = arith.constant 0 : i32
    return %c0_i32, %c0_i32_0 : i32, i32
  }
  func.func @transform_5(%arg0: i32) -> (i32, i32, i32) {
    %c0_i32 = arith.constant 0 : i32
    %c0_i32_0 = arith.constant 0 : i32
    %c0_i32_1 = arith.constant 0 : i32
    return %arg0, %c0_i32, %c0_i32_0 : i32, i32, i32
  }
}

</mosaic_0001>

<llo_original>
// kernel: tpu_custom_call.1
$region0: #{tpu_custom_call.1}
  #allocation0 [shape = 'u32[]', space=smem, size = 0x4, offset = 0x4, fixed_abs, tag = 'smem constant byte address 0x4 - core index']
  #allocation1 [shape = 'u32[72,128]{1,0:T(1,128)}', space=vmem, size = 0x9000, scoped, tag = 'internal scratch']
  %s0 = inlined_call_operand.hbm [shape: bf16[8,8,32], index: 0, kind: input, shape index: {}]
  %s1 = inlined_call_operand.hbm [shape: bf16[8,16,32], index: 1, kind: input, shape index: {}]
  %s2 = inlined_call_operand.hbm [shape: f32[8,1,16], index: 2, kind: input, shape index: {}]
  %s3 = inlined_call_operand.hbm [shape: bf16[32,32], index: 3, kind: input, shape index: {}]
  %s4 = inlined_call_operand.hbm [shape: bf16[32,64], index: 4, kind: input, shape index: {}]
  %s5 = inlined_call_operand.hbm [shape: f32[8,8,32], index: 5, kind: output, shape index: {}]
  %s6 = sld [smem:[#allocation0]]
  $region73: #{tpu_custom_call.1} parent=0
    _
  %s8 = ssub.s32 1, %s6
  %s9 = scalar_select 0, %s8, %s6
  $region1: #{tpu_custom_call.1} parent=0
    #allocation2 [shape = 'u8[16384]{0}', space=vmem, size = 0x4000, scoped, tag = 'input window, operand 0']
    #allocation3 [shape = 's32[2]{0}', space=sflag, size = 0x8, scoped, tag = 'scoped memory for tpu_custom_call.1']
    #allocation4 [shape = 's32[2]{0}', space=sflag, size = 0x8, scoped, tag = 'scoped memory for tpu_custom_call.1']
    #allocation5 [shape = 'u8[32768]{0}', space=vmem, size = 0x8000, scoped, tag = 'input window, operand 1']
    #allocation6 [shape = 's32[2]{0}', space=sflag, size = 0x8, scoped, tag = 'scoped memory for tpu_custom_call.1']
    #allocation7 [shape = 'u8[4096]{0}', space=vmem, size = 0x1000, scoped, tag = 'input window, operand 2']
    #allocation8 [shape = 'u8[8192]{0}', space=vmem, size = 0x2000, scoped, tag = 'input window, operand 3, single buffered']
    #allocation9 [shape = 's32[1]{0}', space=sflag, size = 0x4, scoped, tag = 'scoped memory for tpu_custom_call.1']
    #allocation10 [shape = 'u8[8192]{0}', space=vmem, size = 0x2000, scoped, tag = 'input window, operand 4, single buffered']
    #allocation11 [shape = 'u8[32768]{0}', space=vmem, size = 0x8000, scoped, tag = 'output window, operand 0']
    %10 = vsyncpa [#allocation3], 0
    %s11 = scalar_lea.sflag [#allocation3], 1
    %12 = vsyncpa %s11, 0
    %13 = vsyncpa [#allocation6], 0
    %s14 = scalar_lea.sflag [#allocation6], 1
    %15 = vsyncpa %s14, 0
    %16 = vsyncpa [#allocation9], 0
    %17 = vsyncpa [#allocation4], 0
    %s18 = scalar_lea.sflag [#allocation4], 1
    %19 = vsyncpa %s18, 0
    loop: start=0, step=1, limit=4
    $region2: #{tpu_custom_call.1} parent=1 // loop_pre_header
      _
    $region3: #{tpu_custom_call.1} parent=1 // loop_header
      %s21 = sphi 0, %s25
      %p22 = scmp.ge.s32.totalorder %s21, 4
      %s31 = sphi 0, %s33
      %s34 = sphi 0, %s31
      %s35 = sphi 0, %s34
      %s51 = sphi 0, %s35
      %s57 = sphi 0, %s59
      %s60 = sphi 0, %s57
      %s61 = sphi 0, %s60
      %s77 = sphi 0, %s61
      %s83 = sphi 0, %s85
      %s86 = sphi 0, %s83
      %s87 = sphi 0, %s86
      %s103 = sphi 0, %s87
      %s107 = sphi 0, %s107
      %s109 = sphi 0, %s107
      %s110 = sphi 0, %s109
      %s124 = sphi 0, %s110
      %s128 = sphi 0, %s128
      %s130 = sphi 0, %s128
      %s131 = sphi 0, %s130
      %s145 = sphi 0, %s131
      %s151 = sphi 0, %s153
      %s154 = sphi 0, %s151
      %s155 = sphi 0, %s154
      %s171 = sphi 0, %s155
    $region4: #{tpu_custom_call.1} parent=1 // loop_header_branch
      %24 = sbr.rel (%p22) target = $region8
    $region5: #{tpu_custom_call.1} parent=1 // loop_body
      %s26 = ssub.s32 %s21, 1
      %s27 = ssub.s32 %s21, 2
      %s28 = sadd.s32 %s21, 1
      %s29 = ssub.s32 %s21, %s28
      %p30 = scmp.eq.s32.totalorder %s29, 0
      %s32 = sadd.s32 %s31, 1
      %s33 = scalar_select %p30, %s31, %s32
      %p36 = pneg %p30
      %p37 = scmp.eq.s32.totalorder %s21, 1
      %p38 = por %p36, %p37
      %p39 = scmp.ne.s32.totalorder %s31, %s34
      %p40 = scmp.eq.s32.totalorder %s21, 0
      %p41 = por %p39, %p40
      %p42 = scmp.ne.s32.totalorder %s31, %s34
      %p43 = scmp.eq.s32.totalorder %s26, 1
      %p44 = por %p42, %p43
      %p45 = scmp.ne.s32.totalorder %s34, %s35
      %p46 = scmp.eq.s32.totalorder %s26, 0
      %p47 = por %p45, %p46
      %p48 = scmp.ne.s32.totalorder %s34, %s35
      %p49 = scmp.eq.s32.totalorder %s27, 1
      %p50 = por %p48, %p49
      %p52 = scmp.ne.s32.totalorder %s35, %s51
      %p53 = scmp.eq.s32.totalorder %s27, 0
      %p54 = por %p52, %p53
      %s55 = ssub.s32 %s21, %s28
      %p56 = scmp.eq.s32.totalorder %s55, 0
      %s58 = sadd.s32 %s57, 1
      %s59 = scalar_select %p56, %s57, %s58
      %p62 = pneg %p56
      %p63 = scmp.eq.s32.totalorder %s21, 1
      %p64 = por %p62, %p63
      %p65 = scmp.ne.s32.totalorder %s57, %s60
      %p66 = scmp.eq.s32.totalorder %s21, 0
      %p67 = por %p65, %p66
      %p68 = scmp.ne.s32.totalorder %s57, %s60
      %p69 = scmp.eq.s32.totalorder %s26, 1
      %p70 = por %p68, %p69
      %p71 = scmp.ne.s32.totalorder %s60, %s61
      %p72 = scmp.eq.s32.totalorder %s26, 0
      %p73 = por %p71, %p72
      %p74 = scmp.ne.s32.totalorder %s60, %s61
      %p75 = scmp.eq.s32.totalorder %s27, 1
      %p76 = por %p74, %p75
      %p78 = scmp.ne.s32.totalorder %s61, %s77
      %p79 = scmp.eq.s32.totalorder %s27, 0
      %p80 = por %p78, %p79
      %s81 = ssub.s32 %s21, %s28
      %p82 = scmp.eq.s32.totalorder %s81, 0
      %s84 = sadd.s32 %s83, 1
      %s85 = scalar_select %p82, %s83, %s84
      %p88 = pneg %p82
      %p89 = scmp.eq.s32.totalorder %s21, 1
      %p90 = por %p88, %p89
      %p91 = scmp.ne.s32.totalorder %s83, %s86
      %p92 = scmp.eq.s32.totalorder %s21, 0
      %p93 = por %p91, %p92
      %p94 = scmp.ne.s32.totalorder %s83, %s86
      %p95 = scmp.eq.s32.totalorder %s26, 1
      %p96 = por %p94, %p95
      %p97 = scmp.ne.s32.totalorder %s86, %s87
      %p98 = scmp.eq.s32.totalorder %s26, 0
      %p99 = por %p97, %p98
      %p100 = scmp.ne.s32.totalorder %s86, %s87
      %p101 = scmp.eq.s32.totalorder %s27, 1
      %p102 = por %p100, %p101
      %p104 = scmp.ne.s32.totalorder %s87, %s103
      %p105 = scmp.eq.s32.totalorder %s27, 0
      %p106 = por %p104, %p105
      %s108 = sadd.s32 %s107, 1
      %p111 = scmp.eq.s32.totalorder %s21, 1
      %p112 = scmp.ne.s32.totalorder %s107, %s109
      %p113 = scmp.eq.s32.totalorder %s21, 0
      %p114 = por %p112, %p113
      %p115 = scmp.ne.s32.totalorder %s107, %s109
      %p116 = scmp.eq.s32.totalorder %s26, 1
      %p117 = por %p115, %p116
      %p118 = scmp.ne.s32.totalorder %s109, %s110
      %p119 = scmp.eq.s32.totalorder %s26, 0
      %p120 = por %p118, %p119
      %p121 = scmp.ne.s32.totalorder %s109, %s110
      %p122 = scmp.eq.s32.totalorder %s27, 1
      %p123 = por %p121, %p122
      %p125 = scmp.ne.s32.totalorder %s110, %s124
      %p126 = scmp.eq.s32.totalorder %s27, 0
      %p127 = por %p125, %p126
      %s129 = sadd.s32 %s128, 1
      %p132 = scmp.eq.s32.totalorder %s21, 1
      %p133 = scmp.ne.s32.totalorder %s128, %s130
      %p134 = scmp.eq.s32.totalorder %s21, 0
      %p135 = por %p133, %p134
      %p136 = scmp.ne.s32.totalorder %s128, %s130
      %p137 = scmp.eq.s32.totalorder %s26, 1
      %p138 = por %p136, %p137
      %p139 = scmp.ne.s32.totalorder %s130, %s131
      %p140 = scmp.eq.s32.totalorder %s26, 0
      %p141 = por %p139, %p140
      %p142 = scmp.ne.s32.totalorder %s130, %s131
      %p143 = scmp.eq.s32.totalorder %s27, 1
      %p144 = por %p142, %p143
      %p146 = scmp.ne.s32.totalorder %s131, %s145
      %p147 = scmp.eq.s32.totalorder %s27, 0
      %p148 = por %p146, %p147
      %s149 = ssub.s32 %s21, %s28
      %p150 = scmp.eq.s32.totalorder %s149, 0
      %s152 = sadd.s32 %s151, 1
      %s153 = scalar_select %p150, %s151, %s152
      %p156 = pneg %p150
      %p157 = scmp.eq.s32.totalorder %s21, 1
      %p158 = por %p156, %p157
      %p159 = scmp.ne.s32.totalorder %s151, %s154
      %p160 = scmp.eq.s32.totalorder %s21, 0
      %p161 = por %p159, %p160
      %p162 = scmp.ne.s32.totalorder %s151, %s154
      %p163 = scmp.eq.s32.totalorder %s26, 1
      %p164 = por %p162, %p163
      %p165 = scmp.ne.s32.totalorder %s154, %s155
      %p166 = scmp.eq.s32.totalorder %s26, 0
      %p167 = por %p165, %p166
      %p168 = scmp.ne.s32.totalorder %s154, %s155
      %p169 = scmp.eq.s32.totalorder %s27, 1
      %p170 = por %p168, %p169
      %p172 = scmp.ne.s32.totalorder %s155, %s171
      %p173 = scmp.eq.s32.totalorder %s27, 0
      %p174 = por %p172, %p173
      %p175 = scmp.le.s32.totalorder 1, %s21
      %p176 = scmp.lt.s32.totalorder %s21, 3
      %p177 = pnand %p175, %p176
      %p178 = pneg %p177
      // Predicated region
      $region9: #{tpu_custom_call.1} parent=5 // pred_check
        _
      $region10: #{tpu_custom_call.1} parent=5 // pred_check_branch
        %180 = sbr.rel (%p177) target = $region12
      $region11: #{tpu_custom_call.1} parent=5 // pred_region
        %s181 = ssub.s32 %s21, 1
        // Predicated region
        $region13: #{tpu_custom_call.1} parent=11 // pred_check
          %p182 = pneg %p120
        $region14: #{tpu_custom_call.1} parent=11 // pred_check_branch
          %184 = sbr.rel (%p182) target = $region16
        $region15: #{tpu_custom_call.1} parent=11 // pred_region
          %186 = vsyncadd [#allocation9], 0
          %s187 = sshll.u32 %s3, 4
          %s188 = int_to_ptr.hbm [resolvable:$true] %s187
          %s189 = sshll.u32 [#allocation8], 4
          %s190 = int_to_ptr.vmem [resolvable:$true] %s189
          %195 = dma.hbm_to_vmem [thread:$0]  %s188, 256, %s190, [#allocation9], 64, 64, 4
        $region16: #{tpu_custom_call.1} parent=11 // pred_fallthru
          _
        // Predicated region
        $region17: #{tpu_custom_call.1} parent=11 // pred_check
          %p196 = pneg %p141
        $region18: #{tpu_custom_call.1} parent=11 // pred_check_branch
          %198 = sbr.rel (%p196) target = $region20
        $region19: #{tpu_custom_call.1} parent=11 // pred_region
          %200 = vsyncadd [#allocation9], 0
          %s201 = sshll.u32 %s4, 4
          %s202 = int_to_ptr.hbm [resolvable:$true] %s201
          %s203 = sshll.u32 [#allocation10], 4
          %s204 = int_to_ptr.vmem [resolvable:$true] %s203
          %209 = dma.hbm_to_vmem [thread:$0]  %s202, 256, %s204, [#allocation9], 64, 64, 4
        $region20: #{tpu_custom_call.1} parent=11 // pred_fallthru
          _
      $region12: #{tpu_custom_call.1} parent=5 // pred_fallthru
        _
      %p210 = scmp.lt.s32.totalorder %s21, 2
      // Predicated region
      $region21: #{tpu_custom_call.1} parent=5 // pred_check
        %p211 = pneg %p210
      $region22: #{tpu_custom_call.1} parent=5 // pred_check_branch
        %213 = sbr.rel (%p211) target = $region24
      $region23: #{tpu_custom_call.1} parent=5 // pred_region
        // Predicated region
        $region25: #{tpu_custom_call.1} parent=23 // pred_check
          %p214 = pneg %p41
        $region26: #{tpu_custom_call.1} parent=23 // pred_check_branch
          %216 = sbr.rel (%p214) target = $region28
        $region27: #{tpu_custom_call.1} parent=23 // pred_region
          %s217 = sand.u32 %s31, 1
          %s218 = scalar_lea.sflag [#allocation3], %s217
          %s219 = sand.u32 %s31, 1
          %s220 = smul.addr %s219, 16
          %s221 = scalar_lea.vmem [#allocation2], %s220
          %s222 = smul.u32 4, %s21
          %224 = vsyncadd %s218, 0
          %s225 = smul.addr %s222, 4
          %s226 = scalar_lea.hbm %s0, %s225
          %s227 = sshll.u32 %s226, 4
          %s228 = int_to_ptr.hbm [resolvable:$true] %s227
          %s229 = sshll.u32 %s221, 4
          %s230 = int_to_ptr.vmem [resolvable:$true] %s229
          %235 = dma.hbm_to_vmem [thread:$0]  %s228, 256, %s230, %s218, 64, 64, 4
        $region28: #{tpu_custom_call.1} parent=23 // pred_fallthru
          _
        // Predicated region
        $region29: #{tpu_custom_call.1} parent=23 // pred_check
          %p236 = pneg %p67
        $region30: #{tpu_custom_call.1} parent=23 // pred_check_branch
          %238 = sbr.rel (%p236) target = $region32
        $region31: #{tpu_custom_call.1} parent=23 // pred_region
          %s239 = sand.u32 %s21, 1
          %s240 = scalar_lea.sflag [#allocation6], %s239
          %s241 = sand.u32 %s57, 1
          %s242 = smul.addr %s241, 32
          %s243 = scalar_lea.vmem [#allocation5], %s242
          %s244 = smul.u32 4, %s21
          %246 = vsyncadd %s240, 0
          %s247 = smul.addr %s244, 2
          %s248 = smul.addr %s247, 4
          %s249 = scalar_lea.hbm %s1, %s248
          %s250 = sshll.u32 %s249, 4
          %s251 = int_to_ptr.hbm [resolvable:$true] %s250
          %s252 = sshll.u32 %s243, 4
          %s253 = int_to_ptr.vmem [resolvable:$true] %s252
          %258 = dma.hbm_to_vmem [thread:$0]  %s251, 512, %s253, %s240, 64, 64, 4
        $region32: #{tpu_custom_call.1} parent=23 // pred_fallthru
          _
        // Predicated region
        $region33: #{tpu_custom_call.1} parent=23 // pred_check
          %p259 = pneg %p93
        $region34: #{tpu_custom_call.1} parent=23 // pred_check_branch
          %261 = sbr.rel (%p259) target = $region36
        $region35: #{tpu_custom_call.1} parent=23 // pred_region
          %s262 = sand.u32 %s21, 1
          %s263 = scalar_lea.sflag [#allocation6], %s262
          %s264 = sand.u32 %s83, 1
          %s265 = smul.addr %s264, 4
          %s266 = scalar_lea.vmem [#allocation7], %s265
          %s267 = smul.u32 4, %s21
          %269 = vsyncadd %s263, 0
          %s270 = scalar_lea.hbm %s2, %s267
          %s271 = sshll.u32 %s270, 4
          %s272 = int_to_ptr.hbm [resolvable:$true] %s271
          %s273 = sshll.u32 %s266, 4
          %s274 = int_to_ptr.vmem [resolvable:$true] %s273
          %279 = dma.hbm_to_vmem [thread:$0]  %s272, 64, %s274, %s263, 16, 16, 1
        $region36: #{tpu_custom_call.1} parent=23 // pred_fallthru
          _
      $region24: #{tpu_custom_call.1} parent=5 // pred_fallthru
        _
      %p280 = scmp.le.s32.totalorder 1, %s21
      %p281 = scmp.lt.s32.totalorder %s21, 3
      %p282 = pnand %p280, %p281
      %p283 = pneg %p282
      // Predicated region
      $region37: #{tpu_custom_call.1} parent=5 // pred_check
        _
      $region38: #{tpu_custom_call.1} parent=5 // pred_check_branch
        %285 = sbr.rel (%p282) target = $region40
      $region39: #{tpu_custom_call.1} parent=5 // pred_region
        %s286 = ssub.s32 %s21, 1
        %s287 = sand.u32 %s34, 1
        %s288 = scalar_lea.sflag [#allocation3], %s287
        %s289 = sand.u32 %s34, 1
        %s290 = smul.addr %s289, 16
        %s291 = scalar_lea.vmem [#allocation2], %s290
        // Predicated region
        $region41: #{tpu_custom_call.1} parent=39 // pred_check
          %p292 = pneg %p47
        $region42: #{tpu_custom_call.1} parent=39 // pred_check_branch
          %294 = sbr.rel (%p292) target = $region44
        $region43: #{tpu_custom_call.1} parent=39 // pred_region
          %296 = dma.done %s288, 256
        $region44: #{tpu_custom_call.1} parent=39 // pred_fallthru
          _
        %s297 = sand.u32 %s26, 1
        %s298 = scalar_lea.sflag [#allocation6], %s297
        %s299 = sand.u32 %s60, 1
        %s300 = smul.addr %s299, 32
        %s301 = scalar_lea.vmem [#allocation5], %s300
        // Predicated region
        $region45: #{tpu_custom_call.1} parent=39 // pred_check
          %p302 = pneg %p73
        $region46: #{tpu_custom_call.1} parent=39 // pred_check_branch
          %304 = sbr.rel (%p302) target = $region48
        $region47: #{tpu_custom_call.1} parent=39 // pred_region
          %306 = dma.done %s298, 512
        $region48: #{tpu_custom_call.1} parent=39 // pred_fallthru
          _
        %s307 = sand.u32 %s26, 1
        %s308 = scalar_lea.sflag [#allocation6], %s307
        %s309 = sand.u32 %s86, 1
        %s310 = smul.addr %s309, 4
        %s311 = scalar_lea.vmem [#allocation7], %s310
        // Predicated region
        $region49: #{tpu_custom_call.1} parent=39 // pred_check
          %p312 = pneg %p99
        $region50: #{tpu_custom_call.1} parent=39 // pred_check_branch
          %314 = sbr.rel (%p312) target = $region52
        $region51: #{tpu_custom_call.1} parent=39 // pred_region
          %316 = dma.done %s308, 64
        $region52: #{tpu_custom_call.1} parent=39 // pred_fallthru
          _
        // Predicated region
        $region53: #{tpu_custom_call.1} parent=39 // pred_check
          %p317 = pneg %p120
        $region54: #{tpu_custom_call.1} parent=39 // pred_check_branch
          %319 = sbr.rel (%p317) target = $region56
        $region55: #{tpu_custom_call.1} parent=39 // pred_region
          %321 = dma.done [#allocation9], 256
        $region56: #{tpu_custom_call.1} parent=39 // pred_fallthru
          _
        // Predicated region
        $region57: #{tpu_custom_call.1} parent=39 // pred_check
          %p322 = pneg %p141
        $region58: #{tpu_custom_call.1} parent=39 // pred_check_branch
          %324 = sbr.rel (%p322) target = $region60
        $region59: #{tpu_custom_call.1} parent=39 // pred_region
          %326 = dma.done [#allocation9], 256
        $region60: #{tpu_custom_call.1} parent=39 // pred_fallthru
          _
        %s327 = sand.u32 %s34, 1
        %s328 = scalar_lea.sflag [#allocation3], %s327
        %s329 = sand.u32 %s34, 1
        %s330 = smul.addr %s329, 16
        %s331 = scalar_lea.vmem [#allocation2], %s330
        %p332 = pneg %p47
        %p333 = pneg %p44
        %s334 = sand.u32 %s26, 1
        %s335 = scalar_lea.sflag [#allocation6], %s334
        %s336 = sand.u32 %s60, 1
        %s337 = smul.addr %s336, 32
        %s338 = scalar_lea.vmem [#allocation5], %s337
        %p339 = pneg %p73
        %p340 = pneg %p70
        %s341 = sand.u32 %s26, 1
        %s342 = scalar_lea.sflag [#allocation6], %s341
        %s343 = sand.u32 %s86, 1
        %s344 = smul.addr %s343, 4
        %s345 = scalar_lea.vmem [#allocation7], %s344
        %p346 = pneg %p99
        %p347 = pneg %p96
        %p348 = pneg %p120
        %p349 = pneg %p117
        %p350 = pneg %p141
        %p351 = pneg %p138
        %p352 = pneg %p167
        %p353 = pneg %p164
        %s354 = sand.u32 %s154, 1
        %s355 = scalar_lea.sflag [#allocation4], %s354
        %s356 = sand.u32 %s154, 1
        %s357 = smul.addr %s356, 32
        %s358 = scalar_lea.vmem [#allocation11], %s357
        %s359 = smul.u32 4, %s26
        %s360 = smul.u32 4, %s26
        %s361 = smul.u32 4, %s26
        %s362 = smul.u32 4, %s26
        %v364 = vld [vmem:[%s291] sm:$0xf]
        %v365 = vld [vmem:[%s291 + $0x4] sm:$0xf]
        %v366 = vld [vmem:[%s291 + $0x8] sm:$0xf]
        %v367 = vld [vmem:[%s291 + $0xc] sm:$0xf]
        %v368 = vld [vmem:[%s301] sm:$0xf]
        %v369 = vld [vmem:[%s301 + $0x4] sm:$0xf]
        %v370 = vld [vmem:[%s301 + $0x8] sm:$0xf]
        %v371 = vld [vmem:[%s301 + $0xc] sm:$0xf]
        %v372 = vld [vmem:[%s301 + $0x10] sm:$0xf]
        %v373 = vld [vmem:[%s301 + $0x14] sm:$0xf]
        %v374 = vld [vmem:[%s301 + $0x18] sm:$0xf]
        %v375 = vld [vmem:[%s301 + $0x1c] sm:$0xf]
        %v376 = vld [vmem:[#allocation8] sm:$0xf]
        %v377 = vld [vmem:[#allocation8 + $0x4] sm:$0xf]
        %v378 = vld [vmem:[#allocation8 + $0x8] sm:$0xf]
        %v379 = vld [vmem:[#allocation8 + $0xc] sm:$0xf]
        %v384 = vunpack.c.l.b16 %v364
        %v385 = vunpack.c.l.b16 %v365
        %v386 = vunpack.c.l.b16 %v366
        %v387 = vunpack.c.l.b16 %v367
        %v388 = vpack.c.b16 %v385, %v384
        %v389 = vpack.c.b16 %v387, %v386
        %v394 = vunpack.c.l.b16 %v376
        %v395 = vunpack.c.l.b16 %v377
        %v396 = vunpack.c.l.b16 %v378
        %v397 = vunpack.c.l.b16 %v379
        %v398 = vpack.c.b16 %v395, %v394
        %v399 = vpack.c.b16 %v397, %v396
        %vm402 = vcmask 261120
        %v404 = vsel %vm402, %v388, 0
        %v407 = vsel %vm402, %v389, 0
        %409 = vmatpush.bf16.msra.mxu0 0
        %410 = vmatpush.bf16.msra.mxu0 0
        %411 = vmatpush.bf16.msra.mxu0 0
        %412 = vmatpush.bf16.msra.mxu0 0
        %413 = vmatpush.bf16.msra.mxu0 0
        %414 = vmatpush.bf16.msra.mxu0 0
        %415 = vmatpush.bf16.msra.mxu0 %v399
        %416 = vmatpush.bf16.msra.mxu0 %v398
        %417 = vmatmul.bf16.gmra.mxu0 %v404
        %v418 = vpop.f32.mrf.mxu0
        %v419 = vadd.f32 0.0, %v418
        %v420 = vpop.f32.mrf.mxu0
        %v421 = vadd.f32 0.0, %v420
        %422 = vmatmul.bf16.gmra.mxu0 %v407
        %v423 = vpop.f32.mrf.mxu0
        %v424 = vadd.f32 0.0, %v423
        %v425 = vpop.f32.mrf.mxu0
        %v426 = vadd.f32 0.0, %v425
        %427 = vdwg.mxu0
        %v428 = vmul.f32 %v419, 0.17677669
        %v429 = vmul.f32 %v421, 0.17677669
        %v430 = vmul.f32 %v424, 0.17677669
        %v431 = vmul.f32 %v426, 0.17677669
        %v432 = vld [vmem:[#allocation10] sm:$0xf]
        %v433 = vld [vmem:[#allocation10 + $0x4] sm:$0xf]
        %v434 = vld [vmem:[#allocation10 + $0x8] sm:$0xf]
        %v435 = vld [vmem:[#allocation10 + $0xc] sm:$0xf]
        %v444 = vunpack.c.l.b16 %v368
        %v445 = vunpack.c.l.b16 %v369
        %v446 = vunpack.c.l.b16 %v370
        %v447 = vunpack.c.l.b16 %v371
        %v448 = vunpack.c.l.b16 %v372
        %v449 = vunpack.c.l.b16 %v373
        %v450 = vunpack.c.l.b16 %v374
        %v451 = vunpack.c.l.b16 %v375
        %v452 = vpack.c.b16 %v445, %v444
        %v453 = vpack.c.b16 %v447, %v446
        %v454 = vpack.c.b16 %v449, %v448
        %v455 = vpack.c.b16 %v451, %v450
        %v460 = vunpack.c.l.b16 %v432
        %v461 = vunpack.c.l.b16 %v433
        %v462 = vunpack.c.l.b16 %v434
        %v463 = vunpack.c.l.b16 %v435
        %v464 = vpack.c.b16 %v461, %v460
        %v465 = vpack.c.b16 %v463, %v462
        %v469 = vsel %vm402, %v452, 0
        %v472 = vsel %vm402, %v453, 0
        %v475 = vsel %vm402, %v454, 0
        %v478 = vsel %vm402, %v455, 0
        %480 = vmatpush.bf16.msra.mxu0 0
        %481 = vmatpush.bf16.msra.mxu0 0
        %482 = vmatpush.bf16.msra.mxu0 0
        %483 = vmatpush.bf16.msra.mxu0 0
        %484 = vmatpush.bf16.msra.mxu0 0
        %485 = vmatpush.bf16.msra.mxu0 0
        %486 = vmatpush.bf16.msra.mxu0 %v465
        %487 = vmatpush.bf16.msra.mxu0 %v464
        %488 = vmatmul.bf16.gmra.mxu0 %v469
        %v489 = vpop.f32.mrf.mxu0
        %v490 = vadd.f32 0.0, %v489
        %v491 = vpop.f32.mrf.mxu0
        %v492 = vadd.f32 0.0, %v491
        %493 = vmatmul.bf16.gmra.mxu0 %v472
        %v494 = vpop.f32.mrf.mxu0
        %v495 = vadd.f32 0.0, %v494
        %v496 = vpop.f32.mrf.mxu0
        %v497 = vadd.f32 0.0, %v496
        %498 = vmatmul.bf16.gmra.mxu0 %v475
        %v499 = vpop.f32.mrf.mxu0
        %v500 = vadd.f32 0.0, %v499
        %v501 = vpop.f32.mrf.mxu0
        %v502 = vadd.f32 0.0, %v501
        %503 = vmatmul.bf16.gmra.mxu0 %v478
        %v504 = vpop.f32.mrf.mxu0
        %v505 = vadd.f32 0.0, %v504
        %v506 = vpop.f32.mrf.mxu0
        %v507 = vadd.f32 0.0, %v506
        %508 = vdwg.mxu0
        %v509 = vld [vmem:[%s311] sm:$0x1]
        %v510 = vld [vmem:[%s311 + $0x1] sm:$0x1]
        %v511 = vld [vmem:[%s311 + $0x2] sm:$0x1]
        %v512 = vld [vmem:[%s311 + $0x3] sm:$0x1]
        %v517 = vperm.slane %v509, 0
        %v518 = vperm.slane %v510, 0
        %v519 = vperm.slane %v511, 0
        %v520 = vperm.slane %v512, 0
        %v526 = vsel %vm402, %v428, 0
        %v529 = vsel %vm402, %v490, 0
        %v532 = vsel %vm402, %v492, 0
        %534 = vmatpush.xpose.msra.mxu0 0.0
        %535 = vmatpush.xpose.msra.mxu0 0.0
        %536 = vmatpush.xpose.msra.mxu0 0.0
        %537 = vmatpush.xpose.msra.mxu0 0.0
        %538 = vmatpush.xpose.msra.mxu0 0.0
        %539 = vmatpush.xpose.msra.mxu0 0.0
        %540 = vmatpush.xpose.msra.mxu0 0.0
        %541 = vmatpush.xpose.msra.mxu0 0.0
        %542 = vmatpush.xpose.msra.mxu0 0.0
        %543 = vmatpush.xpose.msra.mxu0 0.0
        %544 = vmatpush.xpose.msra.mxu0 0.0
        %545 = vmatpush.xpose.msra.mxu0 0.0
        %546 = vmatpush.xpose.msra.mxu0 0.0
        %547 = vmatpush.xpose.msra.mxu0 0.0
        %548 = vmatpush.xpose.msra.mxu0 %v532
        %549 = vmatpush.xpose.msra.mxu0 %v529
        %550 = vmatmul.f32.gmra.mxu0 %v526
        %v551 = vpop.f32.mrf.mxu0
        %v552 = vadd.f32 %v517, %v551
        %553 = vdwg.mxu0
        %v555 = vsel %vm402, %v429, 0
        %v558 = vsel %vm402, %v495, 0
        %v561 = vsel %vm402, %v497, 0
        %563 = vmatpush.xpose.msra.mxu0 0.0
        %564 = vmatpush.xpose.msra.mxu0 0.0
        %565 = vmatpush.xpose.msra.mxu0 0.0
        %566 = vmatpush.xpose.msra.mxu0 0.0
        %567 = vmatpush.xpose.msra.mxu0 0.0
        %568 = vmatpush.xpose.msra.mxu0 0.0
        %569 = vmatpush.xpose.msra.mxu0 0.0
        %570 = vmatpush.xpose.msra.mxu0 0.0
        %571 = vmatpush.xpose.msra.mxu0 0.0
        %572 = vmatpush.xpose.msra.mxu0 0.0
        %573 = vmatpush.xpose.msra.mxu0 0.0
        %574 = vmatpush.xpose.msra.mxu0 0.0
        %575 = vmatpush.xpose.msra.mxu0 0.0
        %576 = vmatpush.xpose.msra.mxu0 0.0
        %577 = vmatpush.xpose.msra.mxu0 %v561
        %578 = vmatpush.xpose.msra.mxu0 %v558
        %579 = vmatmul.f32.gmra.mxu0 %v555
        %v580 = vpop.f32.mrf.mxu0
        %v581 = vadd.f32 %v518, %v580
        %582 = vdwg.mxu0
        %v584 = vsel %vm402, %v430, 0
        %v587 = vsel %vm402, %v500, 0
        %v590 = vsel %vm402, %v502, 0
        %592 = vmatpush.xpose.msra.mxu0 0.0
        %593 = vmatpush.xpose.msra.mxu0 0.0
        %594 = vmatpush.xpose.msra.mxu0 0.0
        %595 = vmatpush.xpose.msra.mxu0 0.0
        %596 = vmatpush.xpose.msra.mxu0 0.0
        %597 = vmatpush.xpose.msra.mxu0 0.0
        %598 = vmatpush.xpose.msra.mxu0 0.0
        %599 = vmatpush.xpose.msra.mxu0 0.0
        %600 = vmatpush.xpose.msra.mxu0 0.0
        %601 = vmatpush.xpose.msra.mxu0 0.0
        %602 = vmatpush.xpose.msra.mxu0 0.0
        %603 = vmatpush.xpose.msra.mxu0 0.0
        %604 = vmatpush.xpose.msra.mxu0 0.0
        %605 = vmatpush.xpose.msra.mxu0 0.0
        %606 = vmatpush.xpose.msra.mxu0 %v590
        %607 = vmatpush.xpose.msra.mxu0 %v587
        %608 = vmatmul.f32.gmra.mxu0 %v584
        %v609 = vpop.f32.mrf.mxu0
        %v610 = vadd.f32 %v519, %v609
        %611 = vdwg.mxu0
        %v613 = vsel %vm402, %v431, 0
        %v616 = vsel %vm402, %v505, 0
        %v619 = vsel %vm402, %v507, 0
        %621 = vmatpush.xpose.msra.mxu0 0.0
        %622 = vmatpush.xpose.msra.mxu0 0.0
        %623 = vmatpush.xpose.msra.mxu0 0.0
        %624 = vmatpush.xpose.msra.mxu0 0.0
        %625 = vmatpush.xpose.msra.mxu0 0.0
        %626 = vmatpush.xpose.msra.mxu0 0.0
        %627 = vmatpush.xpose.msra.mxu0 0.0
        %628 = vmatpush.xpose.msra.mxu0 0.0
        %629 = vmatpush.xpose.msra.mxu0 0.0
        %630 = vmatpush.xpose.msra.mxu0 0.0
        %631 = vmatpush.xpose.msra.mxu0 0.0
        %632 = vmatpush.xpose.msra.mxu0 0.0
        %633 = vmatpush.xpose.msra.mxu0 0.0
        %634 = vmatpush.xpose.msra.mxu0 0.0
        %635 = vmatpush.xpose.msra.mxu0 %v619
        %636 = vmatpush.xpose.msra.mxu0 %v616
        %637 = vmatmul.f32.gmra.mxu0 %v613
        %v638 = vpop.f32.mrf.mxu0
        %v639 = vadd.f32 %v520, %v638
        %640 = vdwg.mxu0
        %vm641 = vcmask 130048
        %v642 = vsel %vm641, %v552, -inf
        %643 = vmax.xlane.f32.xlu0 %v642
        %v644 = vpop.xlane.xlu0 %643
        %v645 = vsel %vm641, %v581, -inf
        %646 = vmax.xlane.f32.xlu0 %v645
        %v647 = vpop.xlane.xlu0 %646
        %v648 = vsel %vm641, %v610, -inf
        %649 = vmax.xlane.f32.xlu0 %v648
        %v650 = vpop.xlane.xlu0 %649
        %v651 = vsel %vm641, %v639, -inf
        %652 = vmax.xlane.f32.xlu0 %v651
        %v653 = vpop.xlane.xlu0 %652
        %v654 = vsub.f32 %v552, %v644
        %v655 = vsub.f32 %v581, %v647
        %v656 = vsub.f32 %v610, %v650
        %v657 = vsub.f32 %v639, %v653
        %v658 = vmul.f32 %v654, 1.442695
        %v659 = vpow.pop %v658
        %v660 = vmul.f32 %v655, 1.442695
        %v661 = vpow.pop %v660
        %v662 = vmul.f32 %v656, 1.442695
        %v663 = vpow.pop %v662
        %v664 = vmul.f32 %v657, 1.442695
        %v665 = vpow.pop %v664
        %v666 = vsel %vm641, %v659, 0.0
        %667 = vadd.xlane.f32.xlu0 %v666
        %v668 = vpop.xlane.xlu0 %667
        %v669 = vsel %vm641, %v661, 0.0
        %670 = vadd.xlane.f32.xlu0 %v669
        %v671 = vpop.xlane.xlu0 %670
        %v672 = vsel %vm641, %v663, 0.0
        %673 = vadd.xlane.f32.xlu0 %v672
        %v674 = vpop.xlane.xlu0 %673
        %v675 = vsel %vm641, %v665, 0.0
        %676 = vadd.xlane.f32.xlu0 %v675
        %v677 = vpop.xlane.xlu0 %676
        %678 = vrot.lane.b32.xlu0 %v490, 96
        %v679 = vpop.permute.xlu0 %678
        %680 = vrot.lane.b32.xlu0 %v492, 96
        %v681 = vpop.permute.xlu0 %680
        %v685 = vsel %vm641, %v659, 0
        %687 = vmatpush.msra.mxu0 0.0
        %688 = vmatpush.msra.mxu0 0.0
        %689 = vmatpush.msra.mxu0 0.0
        %690 = vmatpush.msra.mxu0 0.0
        %691 = vmatpush.msra.mxu0 0.0
        %692 = vmatpush.msra.mxu0 0.0
        %693 = vmatpush.msra.mxu0 0.0
        %694 = vmatpush.msra.mxu0 0.0
        %695 = vmatpush.msra.mxu0 0.0
        %696 = vmatpush.msra.mxu0 0.0
        %697 = vmatpush.msra.mxu0 0.0
        %698 = vmatpush.msra.mxu0 0.0
        %699 = vmatpush.msra.mxu0 0.0
        %700 = vmatpush.msra.mxu0 0.0
        %701 = vmatpush.msra.mxu0 %v681
        %702 = vmatpush.msra.mxu0 %v679
        %703 = vmatmul.f32.gmra.mxu0 %v685
        %v704 = vpop.f32.mrf.mxu0
        %v705 = vadd.f32 0.0, %v704
        %706 = vdwg.mxu0
        %707 = vrot.lane.b32.xlu0 %v495, 96
        %v708 = vpop.permute.xlu0 %707
        %709 = vrot.lane.b32.xlu0 %v497, 96
        %v710 = vpop.permute.xlu0 %709
        %v714 = vsel %vm641, %v661, 0
        %716 = vmatpush.msra.mxu0 0.0
        %717 = vmatpush.msra.mxu0 0.0
        %718 = vmatpush.msra.mxu0 0.0
        %719 = vmatpush.msra.mxu0 0.0
        %720 = vmatpush.msra.mxu0 0.0
        %721 = vmatpush.msra.mxu0 0.0
        %722 = vmatpush.msra.mxu0 0.0
        %723 = vmatpush.msra.mxu0 0.0
        %724 = vmatpush.msra.mxu0 0.0
        %725 = vmatpush.msra.mxu0 0.0
        %726 = vmatpush.msra.mxu0 0.0
        %727 = vmatpush.msra.mxu0 0.0
        %728 = vmatpush.msra.mxu0 0.0
        %729 = vmatpush.msra.mxu0 0.0
        %730 = vmatpush.msra.mxu0 %v710
        %731 = vmatpush.msra.mxu0 %v708
        %732 = vmatmul.f32.gmra.mxu0 %v714
        %v733 = vpop.f32.mrf.mxu0
        %v734 = vadd.f32 0.0, %v733
        %735 = vdwg.mxu0
        %736 = vrot.lane.b32.xlu0 %v500, 96
        %v737 = vpop.permute.xlu0 %736
        %738 = vrot.lane.b32.xlu0 %v502, 96
        %v739 = vpop.permute.xlu0 %738
        %v743 = vsel %vm641, %v663, 0
        %745 = vmatpush.msra.mxu0 0.0
        %746 = vmatpush.msra.mxu0 0.0
        %747 = vmatpush.msra.mxu0 0.0
        %748 = vmatpush.msra.mxu0 0.0
        %749 = vmatpush.msra.mxu0 0.0
        %750 = vmatpush.msra.mxu0 0.0
        %751 = vmatpush.msra.mxu0 0.0
        %752 = vmatpush.msra.mxu0 0.0
        %753 = vmatpush.msra.mxu0 0.0
        %754 = vmatpush.msra.mxu0 0.0
        %755 = vmatpush.msra.mxu0 0.0
        %756 = vmatpush.msra.mxu0 0.0
        %757 = vmatpush.msra.mxu0 0.0
        %758 = vmatpush.msra.mxu0 0.0
        %759 = vmatpush.msra.mxu0 %v739
        %760 = vmatpush.msra.mxu0 %v737
        %761 = vmatmul.f32.gmra.mxu0 %v743
        %v762 = vpop.f32.mrf.mxu0
        %v763 = vadd.f32 0.0, %v762
        %764 = vdwg.mxu0
        %765 = vrot.lane.b32.xlu0 %v505, 96
        %v766 = vpop.permute.xlu0 %765
        %767 = vrot.lane.b32.xlu0 %v507, 96
        %v768 = vpop.permute.xlu0 %767
        %v772 = vsel %vm641, %v665, 0
        %774 = vmatpush.msra.mxu0 0.0
        %775 = vmatpush.msra.mxu0 0.0
        %776 = vmatpush.msra.mxu0 0.0
        %777 = vmatpush.msra.mxu0 0.0
        %778 = vmatpush.msra.mxu0 0.0
        %779 = vmatpush.msra.mxu0 0.0
        %780 = vmatpush.msra.mxu0 0.0
        %781 = vmatpush.msra.mxu0 0.0
        %782 = vmatpush.msra.mxu0 0.0
        %783 = vmatpush.msra.mxu0 0.0
        %784 = vmatpush.msra.mxu0 0.0
        %785 = vmatpush.msra.mxu0 0.0
        %786 = vmatpush.msra.mxu0 0.0
        %787 = vmatpush.msra.mxu0 0.0
        %788 = vmatpush.msra.mxu0 %v768
        %789 = vmatpush.msra.mxu0 %v766
        %790 = vmatmul.f32.gmra.mxu0 %v772
        %v791 = vpop.f32.mrf.mxu0
        %v792 = vadd.f32 0.0, %v791
        %793 = vdwg.mxu0
        %v794 = vrcp.pop %v668
        %v795 = vrcp.pop %v671
        %v796 = vrcp.pop %v674
        %v797 = vrcp.pop %v677
        %v798 = vmul.f32 %v705, %v794
        %v799 = vmul.f32 %v734, %v795
        %v800 = vmul.f32 %v763, %v796
        %v801 = vmul.f32 %v792, %v797
        %802 = vst.msk [vmem:[%s358] sm:$0xff] %vm402, %v798
        %803 = vst.msk [vmem:[%s358 + $0x8] sm:$0xff] %vm402, %v799
        %804 = vst.msk [vmem:[%s358 + $0x10] sm:$0xff] %vm402, %v800
        %805 = vst.msk [vmem:[%s358 + $0x18] sm:$0xff] %vm402, %v801
        %s806 = sand.u32 %s154, 1
        %s807 = scalar_lea.sflag [#allocation4], %s806
        %s808 = sand.u32 %s154, 1
        %s809 = smul.addr %s808, 32
        %s810 = scalar_lea.vmem [#allocation11], %s809
        // Predicated region
        $region61: #{tpu_custom_call.1} parent=39 // pred_check
          %p811 = pneg %p164
        $region62: #{tpu_custom_call.1} parent=39 // pred_check_branch
          %813 = sbr.rel (%p811) target = $region64
        $region63: #{tpu_custom_call.1} parent=39 // pred_region
          %s814 = smul.u32 4, %s26
          %816 = vsyncadd %s807, 0
          %s817 = smul.addr %s814, 8
          %s818 = scalar_lea.hbm %s5, %s817
          %s819 = sshll.u32 %s810, 4
          %s820 = int_to_ptr.vmem [resolvable:$true] %s819
          %s821 = sshll.u32 %s818, 4
          %s822 = int_to_ptr.hbm [resolvable:$true] %s821
          %827 = dma.vmem_to_hbm [thread:$0]  %s820, 512, %s822, %s807, 128, 128, 8
        $region64: #{tpu_custom_call.1} parent=39 // pred_fallthru
          _
      $region40: #{tpu_custom_call.1} parent=5 // pred_fallthru
        _
      %p828 = scmp.le.s32.totalorder 2, %s21
      // Predicated region
      $region65: #{tpu_custom_call.1} parent=5 // pred_check
        %p829 = pneg %p828
      $region66: #{tpu_custom_call.1} parent=5 // pred_check_branch
        %831 = sbr.rel (%p829) target = $region68
      $region67: #{tpu_custom_call.1} parent=5 // pred_region
        %s832 = ssub.s32 %s21, 2
        // Predicated region
        $region69: #{tpu_custom_call.1} parent=67 // pred_check
          %p833 = pneg %p170
        $region70: #{tpu_custom_call.1} parent=67 // pred_check_branch
          %835 = sbr.rel (%p833) target = $region72
        $region71: #{tpu_custom_call.1} parent=67 // pred_region
          %s836 = sand.u32 %s155, 1
          %s837 = scalar_lea.sflag [#allocation4], %s836
          %s838 = sand.u32 %s155, 1
          %s839 = smul.addr %s838, 32
          %s840 = scalar_lea.vmem [#allocation11], %s839
          %842 = dma.done %s837, 512
        $region72: #{tpu_custom_call.1} parent=67 // pred_fallthru
          _
      $region68: #{tpu_custom_call.1} parent=5 // pred_fallthru
        _
    $region6: #{tpu_custom_call.1} parent=1 // loop_footer
      %s25 = sadd.s32 1, %s21
    $region7: #{tpu_custom_call.1} parent=1 // loop_footer_branch
      %20 = sbr.rel target = $region3
    $region8: #{tpu_custom_call.1} parent=1 // loop_exit
      _
    %843 = vsyncpa [#allocation3], 1
    %s844 = scalar_lea.sflag [#allocation3], 1
    %845 = vsyncpa %s844, 1
    %846 = vsyncpa [#allocation6], 1
    %s847 = scalar_lea.sflag [#allocation6], 1
    %848 = vsyncpa %s847, 1
    %849 = vsyncpa [#allocation9], 1
    %850 = vsyncpa [#allocation4], 1
    %s851 = scalar_lea.sflag [#allocation4], 1
    %852 = vsyncpa %s851, 1

</llo_original>
